<compile_context>
chip_gen: v5e
topology: v5e:2x2
jax: 0.10.0
libtpu: 0.0.40
codegen_flags: <defaults>
</compile_context>

<pallas_src>
import jax
import jax.numpy as jnp
from jax.experimental import pallas as pl
from jax.experimental.pallas import tpu as pltpu


# -----------------------------------------------------------------------------
# Fused kernel: synthetic eps + CFG combine (algebraically folded) + global
# max/min + branchless cfg_apply_threshold clamp.
# -----------------------------------------------------------------------------
def _cfg_fused_kernel(params_ref,                                   # SMEM (2,)
                      x_ref, scale_ref, wx_ref, pooled_ref, wc_ref,  # VMEM inputs
                      out_ref, mm_ref):                              # VMEM outputs
    x = x_ref[...]               # [R, HW]   R = B*C (batch folded into sublanes)
    wxb = wx_ref[...]            # [R, R]    block-diagonal kron(I_B, Wx)
    pooled = pooled_ref[...]     # [R, D]    CFG-combined pooled embedding per row
    wc = wc_ref[...]             # [D, HW]
    scale = scale_ref[...]       # [R, 1]    1/(1+sigma[b]) for each row

    # eps_cfg = (Wx @ x) * 1/(1+sigma) + (pu + s*(pc-pu)) @ Wc    (CFG fold)
    h = jnp.dot(wxb, x, preferred_element_type=jnp.float32) * scale   # [R, HW]
    bias = jnp.dot(pooled, wc, preferred_element_type=jnp.float32)    # [R, HW]
    nx = h + bias                                                     # [R, HW]

    # global max / min (pre-clamp), staged: cross-lane then cross-sublane
    mx = jnp.max(jnp.max(nx, axis=1, keepdims=True), axis=0, keepdims=True)  # [1,1]
    mn = jnp.min(jnp.min(nx, axis=1, keepdims=True), axis=0, keepdims=True)  # [1,1]
    mm_ref[0:1, :] = jnp.broadcast_to(mx, (1, 128))
    mm_ref[1:2, :] = jnp.broadcast_to(mn, (1, 128))

    # cfg_apply_threshold, branchless (thresh <= 0 or in-range -> identity clamp)
    t = jnp.full((1, 1), params_ref[0], dtype=jnp.float32)    # threshold
    cs = jnp.full((1, 1), params_ref[1], dtype=jnp.float32)   # clamp scale (0.7)
    hi = jnp.where(jnp.logical_and(t > 0.0, mx > t),
                   jnp.minimum(jnp.maximum(1.0, cs * mx), t), mx)
    lo = jnp.where(jnp.logical_and(t > 0.0, mn < -t),
                   jnp.maximum(jnp.minimum(-1.0, cs * mn), -t), mn)
    out_ref[...] = jnp.clip(nx, lo, hi)


def cfg_denoise_step(x, sigma, uncond, cond, cond_scale, wx, wc,
                     threshold=0.0, clamp_scale=0.7):
    """Fused CFG diffusion step + cfg_apply_threshold.  Returns (next_x, mm)."""
    B, C, H, W = x.shape
    HW = H * W
    D = uncond.shape[-1]
    R = B * C
    assert HW % 128 == 0, "spatial size must be lane-aligned (see TODO above)"

    # [B,C,H,W] -> [B*C, HW]: contiguous reshape only (no transpose needed)
    xf = x.astype(jnp.float32).reshape(R, HW)

    # pre-pool embeddings and fold the (linear) CFG combine into one vector
    pu = jnp.mean(uncond.astype(jnp.float32), axis=1)      # [B, D]
    pc = jnp.mean(cond.astype(jnp.float32), axis=1)        # [B, D]
    pooled_cfg = pu + cond_scale * (pc - pu)               # [B, D]
    pooled_rep = jnp.repeat(pooled_cfg, C, axis=0)         # [R, D] row per (b, c)

    # block-diagonal channel mix => whole batch in one matmul
    wx_bd = jnp.kron(jnp.eye(B, dtype=jnp.float32), wx.astype(jnp.float32))  # [R, R]

    # per-row sigma scale column (1/(1+sigma[b]) repeated over channels)
    scale_col = jnp.repeat(1.0 / (1.0 + sigma.astype(jnp.float32)), C).reshape(R, 1)

    params = jnp.asarray([float(threshold), float(clamp_scale)], dtype=jnp.float32)

    grid_spec = pltpu.PrefetchScalarGridSpec(
        num_scalar_prefetch=0,
        grid=(1,),
        in_specs=[
            pl.BlockSpec(memory_space=pltpu.MemorySpace.SMEM),   # params (2,)
            pl.BlockSpec((R, HW), lambda i: (0, 0)),             # x  [B*C, HW]
            pl.BlockSpec((R, 1), lambda i: (0, 0)),              # sigma scale col
            pl.BlockSpec((R, R), lambda i: (0, 0)),              # Wx block-diag
            pl.BlockSpec((R, D), lambda i: (0, 0)),              # pooled CFG emb
            pl.BlockSpec((D, HW), lambda i: (0, 0)),             # Wc
        ],
        out_specs=[
            pl.BlockSpec((R, HW), lambda i: (0, 0)),             # clamped next_x
            pl.BlockSpec((2, 128), lambda i: (0, 0)),            # [max; min] pre-clamp
        ],
    )

    out, mm = pl.pallas_call(
        _cfg_fused_kernel,
        out_shape=(jax.ShapeDtypeStruct((R, HW), jnp.float32),
                   jax.ShapeDtypeStruct((2, 128), jnp.float32)),
        grid_spec=grid_spec,
        compiler_params=pltpu.CompilerParams(
            dimension_semantics=("arbitrary",),
            vmem_limit_bytes=32 * 1024 * 1024),
    )(params, xf, scale_col, wx_bd, pooled_rep, wc.astype(jnp.float32))

    return out.reshape(B, C, H, W), mm


# -----------------------------------------------------------------------------
# CFGDenoiser.forward: warmup/threshold bookkeeping is pure Python state (as in
# the torch module); everything data-dependent happens inside the fused kernel.
# -----------------------------------------------------------------------------
class CFGDenoiserPallas:
    def __init__(self, wx, wc, threshold=0, warmup=0):
        self.wx = wx
        self.wc = wc
        self.threshold = threshold
        self.warmup_max = warmup
        self.warmup = max(warmup / 10, 1)

    def __call__(self, x, sigma, uncond, cond, cond_scale):
        if self.warmup < self.warmup_max:
            thresh = max(1, 1 + (self.threshold - 1) * (self.warmup / self.warmup_max))
            self.warmup += 1
        else:
            thresh = self.threshold
        if thresh > self.threshold:
            thresh = self.threshold
        out, _ = cfg_denoise_step(x, sigma, uncond, cond, cond_scale,
                                  self.wx, self.wc, threshold=thresh)
        return out


# -----------------------------------------------------------------------------
# Pure-JAX references for sanity checking.
# -----------------------------------------------------------------------------
def _ref_step(x, sigma, uncond, cond, cond_scale, wx, wc):
    B, C, H, W = x.shape
    xf = x.reshape(B, C, H * W)
    scale = 1.0 / (1.0 + sigma)
    h = jnp.einsum('oc,bcl->bol', wx, xf,
                   precision=jax.lax.Precision.HIGHEST) * scale[:, None, None]

    def inner(emb):
        pooled = emb.mean(axis=1)
        bias = jnp.dot(pooled, wc, precision=jax.lax.Precision.HIGHEST)
        return h + bias[:, None, :]

    u = inner(uncond)
    c = inner(cond)
    return (u + cond_scale * (c - u)).reshape(B, C, H, W)


def _ref_threshold(result, threshold, scale=0.7):
    if threshold <= 0.0:
        return result
    maxval = float(jnp.max(result))
    minval = float(jnp.min(result))
    if maxval < threshold and minval > -threshold:
        return result
    if maxval > threshold:
        maxval = min(max(1, scale * maxval), threshold)
    if minval < -threshold:
        minval = max(min(-1, scale * minval), -threshold)
    return jnp.clip(result, minval, maxval)


if __name__ == "__main__":
    key = jax.random.PRNGKey(0)
    k_x, k_s, k_u, k_c, k_wx, k_wc = jax.random.split(key, 6)

    B, C, H, W = 2, 4, 16, 16
    S, D = 8, 32

    x = jax.random.normal(k_x, (B, C, H, W), dtype=jnp.float32)
    sigma = jax.random.uniform(k_s, (B,), dtype=jnp.float32, minval=0.5, maxval=2.0)
    uncond = jax.random.normal(k_u, (B, S, D), dtype=jnp.float32)
    cond = jax.random.normal(k_c, (B, S, D), dtype=jnp.float32)
    cond_scale = 7.5

    # deterministic synthetic "inner model" weights
    wx = jax.random.normal(k_wx, (C, C), dtype=jnp.float32) / jnp.sqrt(C)
    wc = jax.random.normal(k_wc, (D, H * W), dtype=jnp.float32) / jnp.sqrt(D)

    # 1) un-thresholded fused step vs. pure-JAX reference (threshold<=0 path)
    out0, mm = cfg_denoise_step(x, sigma, uncond, cond, cond_scale, wx, wc,
                                threshold=0.0)
    ref0 = _ref_step(x, sigma, uncond, cond, cond_scale, wx, wc)
    jax.block_until_ready(out0)
    assert out0.shape == (B, C, H, W)
    assert jnp.allclose(out0, ref0, atol=0.1, rtol=0.1), "diffusion step mismatch"
    assert jnp.allclose(mm[0, 0], jnp.max(ref0), atol=0.1), "max mismatch"
    assert jnp.allclose(mm[1, 0], jnp.min(ref0), atol=0.1), "min mismatch"

    # 2) full CFGDenoiser.forward (warmup logic gives thresh = 1.5 on first call)
    denoiser = CFGDenoiserPallas(wx, wc, threshold=2.0, warmup=2)
    out = denoiser(x, sigma, uncond, cond, cond_scale)
    jax.block_until_ready(out)
    ref = _ref_threshold(ref0, 1.5)
    assert out.shape == (B, C, H, W) and out.dtype == jnp.float32
    assert jnp.allclose(out, ref, atol=0.1, rtol=0.1), "thresholded output mismatch"

    print("KERNEL_OK")
</pallas_src>

<mosaic_0001>
module attributes {stable_mosaic.version = 11 : i64} {
  func.func @_cfg_fused_kernel(%arg0: i32, %arg1: memref<2xf32, #tpu.memory_space<smem>>, %arg2: memref<8x256xf32, #tpu.memory_space<vmem>>, %arg3: memref<8x1xf32, #tpu.memory_space<vmem>>, %arg4: memref<8x8xf32, #tpu.memory_space<vmem>>, %arg5: memref<8x32xf32, #tpu.memory_space<vmem>>, %arg6: memref<32x256xf32, #tpu.memory_space<vmem>>, %arg7: memref<8x256xf32, #tpu.memory_space<vmem>>, %arg8: memref<2x128xf32, #tpu.memory_space<vmem>>) attributes {dimension_semantics = [#tpu.dimension_semantics<arbitrary>], iteration_bounds = array<i64: 1>, scalar_prefetch = 0 : i64, scratch_operands = 0 : i64, tpu.core_type = #tpu.core_type<tc>, window_params = [{transform_indices = @transform_0, window_bounds = array<i64: 2>}, {pipeline_mode = #tpu.pipeline_mode<synchronous>, transform_indices = @transform_1, window_bounds = array<i64: 8, 256>}, {pipeline_mode = #tpu.pipeline_mode<synchronous>, transform_indices = @transform_2, window_bounds = array<i64: 8, 1>}, {pipeline_mode = #tpu.pipeline_mode<synchronous>, transform_indices = @transform_3, window_bounds = array<i64: 8, 8>}, {pipeline_mode = #tpu.pipeline_mode<synchronous>, transform_indices = @transform_4, window_bounds = array<i64: 8, 32>}, {pipeline_mode = #tpu.pipeline_mode<synchronous>, transform_indices = @transform_5, window_bounds = array<i64: 32, 256>}, {pipeline_mode = #tpu.pipeline_mode<synchronous>, transform_indices = @transform_6, window_bounds = array<i64: 8, 256>}, {pipeline_mode = #tpu.pipeline_mode<synchronous>, transform_indices = @transform_7, window_bounds = array<i64: 2, 128>}]} {
    %c0 = arith.constant 0 : index
    %c0_0 = arith.constant 0 : index
    %0 = vector.load %arg2[%c0, %c0_0] : memref<8x256xf32, #tpu.memory_space<vmem>>, vector<8x256xf32>
    %c0_1 = arith.constant 0 : index
    %c0_2 = arith.constant 0 : index
    %1 = vector.load %arg4[%c0_1, %c0_2] : memref<8x8xf32, #tpu.memory_space<vmem>>, vector<8x8xf32>
    %c0_3 = arith.constant 0 : index
    %c0_4 = arith.constant 0 : index
    %2 = vector.load %arg5[%c0_3, %c0_4] : memref<8x32xf32, #tpu.memory_space<vmem>>, vector<8x32xf32>
    %c0_5 = arith.constant 0 : index
    %c0_6 = arith.constant 0 : index
    %3 = vector.load %arg6[%c0_5, %c0_6] : memref<32x256xf32, #tpu.memory_space<vmem>>, vector<32x256xf32>
    %c0_7 = arith.constant 0 : index
    %c0_8 = arith.constant 0 : index
    %4 = vector.load %arg3[%c0_7, %c0_8] : memref<8x1xf32, #tpu.memory_space<vmem>>, vector<8x1xf32>
    %cst = arith.constant dense<0.000000e+00> : vector<8x256xf32>
    %5 = tpu.matmul %1, %0, %cst {dimension_numbers = #tpu.dot_dimension_numbers<[1], [0], [0], [1], [0, 0, 1, 1], [], []>} : vector<8x8xf32>, vector<8x256xf32>, vector<8x256xf32> -> vector<8x256xf32>
    %6 = vector.broadcast %4 : vector<8x1xf32> to vector<8x256xf32>
    %7 = arith.mulf %5, %6 : vector<8x256xf32>
    %cst_9 = arith.constant dense<0.000000e+00> : vector<8x256xf32>
    %8 = tpu.matmul %2, %3, %cst_9 {dimension_numbers = #tpu.dot_dimension_numbers<[1], [0], [0], [1], [0, 0, 1, 1], [], []>} : vector<8x32xf32>, vector<32x256xf32>, vector<8x256xf32> -> vector<8x256xf32>
    %9 = arith.addf %7, %8 : vector<8x256xf32>
    %cst_10 = arith.constant dense<0xFF800000> : vector<8xf32>
    %10 = vector.multi_reduction <maximumf>, %9, %cst_10 [1] : vector<8x256xf32> to vector<8xf32>
    %11 = vector.shape_cast %10 : vector<8xf32> to vector<8x1xf32>
    %cst_11 = arith.constant dense<0xFF800000> : vector<1xf32>
    %12 = vector.multi_reduction <maximumf>, %11, %cst_11 [0] : vector<8x1xf32> to vector<1xf32>
    %13 = vector.shape_cast %12 : vector<1xf32> to vector<1x1xf32>
    %cst_12 = arith.constant dense<0x7F800000> : vector<8xf32>
    %14 = vector.multi_reduction <minimumf>, %9, %cst_12 [1] : vector<8x256xf32> to vector<8xf32>
    %15 = vector.shape_cast %14 : vector<8xf32> to vector<8x1xf32>
    %cst_13 = arith.constant dense<0x7F800000> : vector<1xf32>
    %16 = vector.multi_reduction <minimumf>, %15, %cst_13 [0] : vector<8x1xf32> to vector<1xf32>
    %17 = vector.shape_cast %16 : vector<1xf32> to vector<1x1xf32>
    %18 = vector.shape_cast %13 : vector<1x1xf32> to vector<1x1xf32>
    %19 = vector.broadcast %18 : vector<1x1xf32> to vector<1x128xf32>
    %c0_14 = arith.constant 0 : index
    %c0_15 = arith.constant 0 : index
    %20 = vector.load %arg8[%c0_14, %c0_15] : memref<2x128xf32, #tpu.memory_space<vmem>>, vector<1x128xf32>
    tpu.vector_store %arg8[%c0_14, %c0_15], %19 {strides = array<i32>} : memref<2x128xf32, #tpu.memory_space<vmem>>, vector<1x128xf32>,
    %21 = vector.shape_cast %17 : vector<1x1xf32> to vector<1x1xf32>
    %22 = vector.broadcast %21 : vector<1x1xf32> to vector<1x128xf32>
    %c1 = arith.constant 1 : index
    %c0_16 = arith.constant 0 : index
    %23 = vector.load %arg8[%c1, %c0_16] : memref<2x128xf32, #tpu.memory_space<vmem>>, vector<1x128xf32>
    tpu.vector_store %arg8[%c1, %c0_16], %22 {strides = array<i32>} : memref<2x128xf32, #tpu.memory_space<vmem>>, vector<1x128xf32>,
    %c0_17 = arith.constant 0 : index
    %24 = memref.load %arg1[%c0_17] : memref<2xf32, #tpu.memory_space<smem>>
    %25 = vector.broadcast %24 : f32 to vector<1x1xf32>
    %c1_18 = arith.constant 1 : index
    %26 = memref.load %arg1[%c1_18] : memref<2xf32, #tpu.memory_space<smem>>
    %27 = vector.broadcast %26 : f32 to vector<1x1xf32>
    %cst_19 = arith.constant 0.000000e+00 : f32
    %28 = vector.broadcast %cst_19 : f32 to vector<1x1xf32>
    %29 = arith.cmpf ogt, %25, %28 : vector<1x1xf32>
    %30 = arith.cmpf ogt, %13, %25 : vector<1x1xf32>
    %31 = arith.andi %29, %30 : vector<1x1xi1>
    %32 = arith.mulf %27, %13 : vector<1x1xf32>
    %cst_20 = arith.constant 1.000000e+00 : f32
    %33 = vector.broadcast %cst_20 : f32 to vector<1x1xf32>
    %34 = arith.maximumf %33, %32 : vector<1x1xf32>
    %35 = arith.minimumf %34, %25 : vector<1x1xf32>
    %36 = arith.select %31, %35, %13 : vector<1x1xi1>, vector<1x1xf32>
    %cst_21 = arith.constant 0.000000e+00 : f32
    %37 = vector.broadcast %cst_21 : f32 to vector<1x1xf32>
    %38 = arith.cmpf ogt, %25, %37 : vector<1x1xf32>
    %cst_22 = arith.constant 0.000000e+00 : f32
    %39 = vector.broadcast %cst_22 : f32 to vector<1x1xf32>
    %40 = arith.subf %39, %25 : vector<1x1xf32>
    %41 = arith.cmpf olt, %17, %40 : vector<1x1xf32>
    %42 = arith.andi %38, %41 : vector<1x1xi1>
    %43 = arith.mulf %27, %17 : vector<1x1xf32>
    %cst_23 = arith.constant -1.000000e+00 : f32
    %44 = vector.broadcast %cst_23 : f32 to vector<1x1xf32>
    %45 = arith.minimumf %44, %43 : vector<1x1xf32>
    %cst_24 = arith.constant 0.000000e+00 : f32
    %46 = vector.broadcast %cst_24 : f32 to vector<1x1xf32>
    %47 = arith.subf %46, %25 : vector<1x1xf32>
    %48 = arith.maximumf %45, %47 : vector<1x1xf32>
    %49 = arith.select %42, %48, %17 : vector<1x1xi1>, vector<1x1xf32>
    %50 = vector.broadcast %49 : vector<1x1xf32> to vector<8x256xf32>
    %51 = arith.maximumf %50, %9 : vector<8x256xf32>
    %52 = vector.broadcast %36 : vector<1x1xf32> to vector<8x256xf32>
    %53 = arith.minimumf %52, %51 : vector<8x256xf32>
    %c0_25 = arith.constant 0 : index
    %c0_26 = arith.constant 0 : index
    %54 = vector.load %arg7[%c0_25, %c0_26] : memref<8x256xf32, #tpu.memory_space<vmem>>, vector<8x256xf32>
    tpu.vector_store %arg7[%c0_25, %c0_26], %53 {strides = array<i32>} : memref<8x256xf32, #tpu.memory_space<vmem>>, vector<8x256xf32>,
    return
  }
  func.func @transform_0(%arg0: i32) -> i32 {
    %c0_i32 = arith.constant 0 : i32
    %c0_i32_0 = arith.constant 0 : i32
    return %c0_i32 : i32
  }
  func.func @transform_1(%arg0: i32) -> (i32, i32) {
    %c0_i32 = arith.constant 0 : i32
    %c0_i32_0 = arith.constant 0 : i32
    %c0_i32_1 = arith.constant 0 : i32
    return %c0_i32, %c0_i32_0 : i32, i32
  }
  func.func @transform_2(%arg0: i32) -> (i32, i32) {
    %c0_i32 = arith.constant 0 : i32
    %c0_i32_0 = arith.constant 0 : i32
    %c0_i32_1 = arith.constant 0 : i32
    return %c0_i32, %c0_i32_0 : i32, i32
  }
  func.func @transform_3(%arg0: i32) -> (i32, i32) {
    %c0_i32 = arith.constant 0 : i32
    %c0_i32_0 = arith.constant 0 : i32
    %c0_i32_1 = arith.constant 0 : i32
    return %c0_i32, %c0_i32_0 : i32, i32
  }
  func.func @transform_4(%arg0: i32) -> (i32, i32) {
    %c0_i32 = arith.constant 0 : i32
    %c0_i32_0 = arith.constant 0 : i32
    %c0_i32_1 = arith.constant 0 : i32
    return %c0_i32, %c0_i32_0 : i32, i32
  }
  func.func @transform_5(%arg0: i32) -> (i32, i32) {
    %c0_i32 = arith.constant 0 : i32
    %c0_i32_0 = arith.constant 0 : i32
    %c0_i32_1 = arith.constant 0 : i32
    return %c0_i32, %c0_i32_0 : i32, i32
  }
  func.func @transform_6(%arg0: i32) -> (i32, i32) {
    %c0_i32 = arith.constant 0 : i32
    %c0_i32_0 = arith.constant 0 : i32
    %c0_i32_1 = arith.constant 0 : i32
    return %c0_i32, %c0_i32_0 : i32, i32
  }
  func.func @transform_7(%arg0: i32) -> (i32, i32) {
    %c0_i32 = arith.constant 0 : i32
    %c0_i32_0 = arith.constant 0 : i32
    %c0_i32_1 = arith.constant 0 : i32
    return %c0_i32, %c0_i32_0 : i32, i32
  }
}

</mosaic_0001>

<llo_original>
// kernel: tpu_custom_call.1
$region0: #{tpu_custom_call.1}
  #allocation0 [shape = 'u32[]', space=smem, size = 0x4, offset = 0x4, fixed_abs, tag = 'smem constant byte address 0x4 - core index']
  #allocation1 [shape = 'u32[72,128]{1,0:T(1,128)}', space=vmem, size = 0x9000, scoped, tag = 'internal scratch']
  %s0 = inlined_call_operand.vmem [shape: f32[2], index: 0, kind: input, shape index: {}]
  %s1 = inlined_call_operand.hbm [shape: f32[8,256], index: 1, kind: input, shape index: {}]
  %s2 = inlined_call_operand.vmem [shape: f32[8,1], index: 2, kind: input, shape index: {}]
  %s3 = inlined_call_operand.vmem [shape: f32[8,8], index: 3, kind: input, shape index: {}]
  %s4 = inlined_call_operand.hbm [shape: f32[8,32], index: 4, kind: input, shape index: {}]
  %s5 = inlined_call_operand.hbm [shape: f32[32,256], index: 5, kind: input, shape index: {}]
  %s6 = inlined_call_operand.hbm [shape: f32[8,256], index: 6, kind: output, shape index: {0}]
  %s7 = inlined_call_operand.hbm [shape: f32[2,128], index: 7, kind: output, shape index: {1}]
  %8 = xla_tuple %s6, %s7
  %s9 = sld [smem:[#allocation0]]
  $region58: #{tpu_custom_call.1} parent=0
    _
  %s11 = ssub.s32 1, %s9
  %s12 = scalar_select 0, %s11, %s9
  $region1: #{tpu_custom_call.1} parent=0
    #allocation2 [shape = 'u8[512]{0}', space=smem, size = 0x200, scoped, tag = 'input window, operand 0, single buffered']
    #allocation3 [shape = 's32[1]{0}', space=sflag, size = 0x4, scoped, tag = 'scoped memory for tpu_custom_call.1']
    #allocation4 [shape = 's32[1]{0}', space=sflag, size = 0x4, scoped, tag = 'scoped memory for tpu_custom_call.1']
    #allocation5 [shape = 's32[1]{0}', space=sflag, size = 0x4, scoped, tag = 'scoped memory for tpu_custom_call.1']
    #allocation6 [shape = 'u8[8192]{0}', space=vmem, size = 0x2000, scoped, tag = 'input window, operand 1, single buffered']
    #allocation7 [shape = 'u8[4096]{0}', space=vmem, size = 0x1000, scoped, tag = 'input window, operand 4, single buffered']
    #allocation8 [shape = 's32[1]{0}', space=sflag, size = 0x4, scoped, tag = 'scoped memory for tpu_custom_call.1']
    #allocation9 [shape = 'u8[32768]{0}', space=vmem, size = 0x8000, scoped, tag = 'input window, operand 5, single buffered']
    #allocation10 [shape = 'u8[8192]{0}', space=vmem, size = 0x2000, scoped, tag = 'output window, operand 0, single buffered']
    #allocation11 [shape = 'u8[1024]{0}', space=vmem, size = 0x400, scoped, tag = 'output window, operand 1, single buffered']
    #allocation12 [shape = 's32[1]{0}', space=sflag, size = 0x4, scoped, tag = 'scoped memory for tpu_custom_call.1']
    %13 = vsyncpa [#allocation5], 0
    %14 = vsyncpa [#allocation3], 0
    %15 = vsyncpa [#allocation8], 0
    %16 = vsyncpa [#allocation4], 0
    %17 = vsyncpa [#allocation12], 0
    // Predicated region
    $region2: #{tpu_custom_call.1} parent=1 // pred_check
      _
    $region3: #{tpu_custom_call.1} parent=1 // pred_check_branch
      %19 = sbr.rel (0) target = $region5
    $region4: #{tpu_custom_call.1} parent=1 // pred_region
      %21 = vsyncadd [#allocation5], 0
      %s23 = sshll.u32 %s0, 4
      %s24 = int_to_ptr.vmem [resolvable:$true] %s23
      %26 = dma.vmem_to_smem %s24, 16, [#allocation2], [#allocation5]
    $region5: #{tpu_custom_call.1} parent=1 // pred_fallthru
      _
    // Predicated region
    $region6: #{tpu_custom_call.1} parent=1 // pred_check
      _
    $region7: #{tpu_custom_call.1} parent=1 // pred_check_branch
      %28 = sbr.rel (0) target = $region9
    $region8: #{tpu_custom_call.1} parent=1 // pred_region
      %30 = vsyncadd [#allocation3], 0
      %s32 = sshll.u32 %s1, 4
      %s33 = int_to_ptr.hbm [resolvable:$true] %s32
      %s34 = sshll.u32 [#allocation6], 4
      %s35 = int_to_ptr.vmem [resolvable:$true] %s34
      %37 = dma.hbm_to_vmem [thread:$0]  %s33, 256, %s35, [#allocation3]
    $region9: #{tpu_custom_call.1} parent=1 // pred_fallthru
      _
    // Predicated region
    $region10: #{tpu_custom_call.1} parent=1 // pred_check
      _
    $region11: #{tpu_custom_call.1} parent=1 // pred_check_branch
      %39 = sbr.rel (0) target = $region13
    $region12: #{tpu_custom_call.1} parent=1 // pred_region
      _
    $region13: #{tpu_custom_call.1} parent=1 // pred_fallthru
      _
    // Predicated region
    $region14: #{tpu_custom_call.1} parent=1 // pred_check
      _
    $region15: #{tpu_custom_call.1} parent=1 // pred_check_branch
      %41 = sbr.rel (0) target = $region17
    $region16: #{tpu_custom_call.1} parent=1 // pred_region
      _
    $region17: #{tpu_custom_call.1} parent=1 // pred_fallthru
      _
    // Predicated region
    $region18: #{tpu_custom_call.1} parent=1 // pred_check
      _
    $region19: #{tpu_custom_call.1} parent=1 // pred_check_branch
      %43 = sbr.rel (0) target = $region21
    $region20: #{tpu_custom_call.1} parent=1 // pred_region
      %45 = vsyncadd [#allocation8], 0
      %s47 = sshll.u32 %s4, 4
      %s48 = int_to_ptr.hbm [resolvable:$true] %s47
      %s49 = sshll.u32 [#allocation7], 4
      %s50 = int_to_ptr.vmem [resolvable:$true] %s49
      %52 = dma.hbm_to_vmem [thread:$0]  %s48, 128, %s50, [#allocation8]
    $region21: #{tpu_custom_call.1} parent=1 // pred_fallthru
      _
    // Predicated region
    $region22: #{tpu_custom_call.1} parent=1 // pred_check
      _
    $region23: #{tpu_custom_call.1} parent=1 // pred_check_branch
      %54 = sbr.rel (0) target = $region25
    $region24: #{tpu_custom_call.1} parent=1 // pred_region
      %56 = vsyncadd [#allocation8], 0
      %s57 = sshll.u32 %s5, 4
      %s58 = int_to_ptr.hbm [resolvable:$true] %s57
      %s59 = sshll.u32 [#allocation9], 4
      %s60 = int_to_ptr.vmem [resolvable:$true] %s59
      %65 = dma.hbm_to_vmem [thread:$0]  %s58, 1024, %s60, [#allocation8], 256, 256, 16
    $region25: #{tpu_custom_call.1} parent=1 // pred_fallthru
      _
    // Predicated region
    $region26: #{tpu_custom_call.1} parent=1 // pred_check
      _
    $region27: #{tpu_custom_call.1} parent=1 // pred_check_branch
      %67 = sbr.rel (0) target = $region29
    $region28: #{tpu_custom_call.1} parent=1 // pred_region
      %69 = dma.done [#allocation5], 16
    $region29: #{tpu_custom_call.1} parent=1 // pred_fallthru
      _
    // Predicated region
    $region30: #{tpu_custom_call.1} parent=1 // pred_check
      _
    $region31: #{tpu_custom_call.1} parent=1 // pred_check_branch
      %71 = sbr.rel (0) target = $region33
    $region32: #{tpu_custom_call.1} parent=1 // pred_region
      %73 = dma.done [#allocation3], 256
    $region33: #{tpu_custom_call.1} parent=1 // pred_fallthru
      _
    // Predicated region
    $region34: #{tpu_custom_call.1} parent=1 // pred_check
      _
    $region35: #{tpu_custom_call.1} parent=1 // pred_check_branch
      %75 = sbr.rel (0) target = $region37
    $region36: #{tpu_custom_call.1} parent=1 // pred_region
      %77 = dma.done [#allocation8], 128
    $region37: #{tpu_custom_call.1} parent=1 // pred_fallthru
      _
    // Predicated region
    $region38: #{tpu_custom_call.1} parent=1 // pred_check
      _
    $region39: #{tpu_custom_call.1} parent=1 // pred_check_branch
      %79 = sbr.rel (0) target = $region41
    $region40: #{tpu_custom_call.1} parent=1 // pred_region
      %81 = dma.done [#allocation8], 1024
    $region41: #{tpu_custom_call.1} parent=1 // pred_fallthru
      _
    %82 = sfence
    %v83 = vld [vmem:[#allocation6] sm:$0xff]
    %v84 = vld [vmem:[#allocation6 + $0x8] sm:$0xff]
    %v85 = vld [vmem:[%s3] sm:$0xff]
    %v86 = vld [vmem:[#allocation7] sm:$0xff]
    %v87 = vld [vmem:[#allocation9] sm:$0xff]
    %v88 = vld [vmem:[#allocation9 + $0x8] sm:$0xff]
    %v89 = vld [vmem:[#allocation9 + $0x10] sm:$0xff]
    %v90 = vld [vmem:[#allocation9 + $0x18] sm:$0xff]
    %v91 = vld [vmem:[#allocation9 + $0x20] sm:$0xff]
    %v92 = vld [vmem:[#allocation9 + $0x28] sm:$0xff]
    %v93 = vld [vmem:[#allocation9 + $0x30] sm:$0xff]
    %v94 = vld [vmem:[#allocation9 + $0x38] sm:$0xff]
    %v95 = vld [vmem:[%s2] sm:$0xff]
    %vm96 = vcmask 64512
    %v98 = vsel %vm96, %v85, 0
    %100 = vmatpush.msra.mxu0 0.0
    %101 = vmatpush.msra.mxu0 0.0
    %102 = vmatpush.msra.mxu0 0.0
    %103 = vmatpush.msra.mxu0 0.0
    %104 = vmatpush.msra.mxu0 0.0
    %105 = vmatpush.msra.mxu0 0.0
    %106 = vmatpush.msra.mxu0 0.0
    %107 = vmatpush.msra.mxu0 0.0
    %108 = vmatpush.msra.mxu0 0.0
    %109 = vmatpush.msra.mxu0 0.0
    %110 = vmatpush.msra.mxu0 0.0
    %111 = vmatpush.msra.mxu0 0.0
    %112 = vmatpush.msra.mxu0 0.0
    %113 = vmatpush.msra.mxu0 0.0
    %114 = vmatpush.msra.mxu0 0.0
    %115 = vmatpush.msra.mxu0 %v83
    %116 = vmatmul.f32.gmra.mxu0 %v98
    %v117 = vpop.f32.mrf.mxu0
    %v118 = vadd.f32 0.0, %v117
    %119 = vdwg.mxu0
    %120 = vmatpush.msra.mxu0 0.0
    %121 = vmatpush.msra.mxu0 0.0
    %122 = vmatpush.msra.mxu0 0.0
    %123 = vmatpush.msra.mxu0 0.0
    %124 = vmatpush.msra.mxu0 0.0
    %125 = vmatpush.msra.mxu0 0.0
    %126 = vmatpush.msra.mxu0 0.0
    %127 = vmatpush.msra.mxu0 0.0
    %128 = vmatpush.msra.mxu0 0.0
    %129 = vmatpush.msra.mxu0 0.0
    %130 = vmatpush.msra.mxu0 0.0
    %131 = vmatpush.msra.mxu0 0.0
    %132 = vmatpush.msra.mxu0 0.0
    %133 = vmatpush.msra.mxu0 0.0
    %134 = vmatpush.msra.mxu0 0.0
    %135 = vmatpush.msra.mxu0 %v84
    %136 = vmatmul.f32.gmra.mxu0 %v98
    %v137 = vpop.f32.mrf.mxu0
    %v138 = vadd.f32 0.0, %v137
    %139 = vdwg.mxu0
    %141 = vset.pattern.permute.xlu0 0
    %142 = vperm.xlu0 %141, %v95
    %v143 = vpop.permute.xlu0 %142
    %v145 = vmul.f32 %v118, %v143
    %v146 = vmul.f32 %v138, %v143
    %vm147 = vcmask 261120
    %v149 = vsel %vm147, %v86, 0
    %151 = vmatpush.msra.mxu0 0.0
    %152 = vmatpush.msra.mxu0 0.0
    %153 = vmatpush.msra.mxu0 0.0
    %154 = vmatpush.msra.mxu0 0.0
    %155 = vmatpush.msra.mxu0 0.0
    %156 = vmatpush.msra.mxu0 0.0
    %157 = vmatpush.msra.mxu0 0.0
    %158 = vmatpush.msra.mxu0 0.0
    %159 = vmatpush.msra.mxu0 0.0
    %160 = vmatpush.msra.mxu0 0.0
    %161 = vmatpush.msra.mxu0 0.0
    %162 = vmatpush.msra.mxu0 0.0
    %163 = vmatpush.msra.mxu0 %v93
    %164 = vmatpush.msra.mxu0 %v91
    %165 = vmatpush.msra.mxu0 %v89
    %166 = vmatpush.msra.mxu0 %v87
    %167 = vmatmul.f32.gmra.mxu0 %v149
    %v168 = vpop.f32.mrf.mxu0
    %v169 = vadd.f32 0.0, %v168
    %170 = vdwg.mxu0
    %171 = vmatpush.msra.mxu0 0.0
    %172 = vmatpush.msra.mxu0 0.0
    %173 = vmatpush.msra.mxu0 0.0
    %174 = vmatpush.msra.mxu0 0.0
    %175 = vmatpush.msra.mxu0 0.0
    %176 = vmatpush.msra.mxu0 0.0
    %177 = vmatpush.msra.mxu0 0.0
    %178 = vmatpush.msra.mxu0 0.0
    %179 = vmatpush.msra.mxu0 0.0
    %180 = vmatpush.msra.mxu0 0.0
    %181 = vmatpush.msra.mxu0 0.0
    %182 = vmatpush.msra.mxu0 0.0
    %183 = vmatpush.msra.mxu0 %v94
    %184 = vmatpush.msra.mxu0 %v92
    %185 = vmatpush.msra.mxu0 %v90
    %186 = vmatpush.msra.mxu0 %v88
    %187 = vmatmul.f32.gmra.mxu0 %v149
    %v188 = vpop.f32.mrf.mxu0
    %v189 = vadd.f32 0.0, %v188
    %190 = vdwg.mxu0
    %v191 = vadd.f32 %v145, %v169
    %v192 = vadd.f32 %v146, %v189
    %v193 = vmax.f32 %v191, %v192
    %194 = vmax.xlane.f32.xlu0 %v193
    %v195 = vpop.xlane.xlu0 %194
    %v196 = vrot.slane %v195, 4
    %v197 = vmax.f32 %v195, %v196
    %v198 = vrot.slane %v197, 2
    %v199 = vmax.f32 %v197, %v198
    %v200 = vrot.slane %v199, 1
    %v201 = vmax.f32 %v199, %v200
    %v202 = vmin.f32 %v191, %v192
    %203 = vmin.xlane.f32.xlu0 %v202
    %v204 = vpop.xlane.xlu0 %203
    %v205 = vrot.slane %v204, 4
    %v206 = vmin.f32 %v204, %v205
    %v207 = vrot.slane %v206, 2
    %v208 = vmin.f32 %v206, %v207
    %v209 = vrot.slane %v208, 1
    %v210 = vmin.f32 %v208, %v209
    %211 = vst [vmem:[#allocation11] sm:$0x1] %v201
    %212 = vst [vmem:[#allocation11 + $0x1] sm:$0x1] %v210
    %s213 = sld [smem:[#allocation2]]
    %v214 = vstv %s213
    %s215 = sld [smem:[#allocation2 + $0x1]]
    %v216 = vstv %s215
    %vm217 = vcmp.gt.f32.partialorder %v214, 0.0
    %vm218 = vcmp.gt.f32.partialorder %v201, %v214
    %vm219 = vmand %vm217, %vm218
    %v220 = vmul.f32 %v216, %v201
    %v221 = vmax.f32 %v220, 1.0
    %v222 = vmin.f32 %v221, %v214
    %v223 = vsel %vm219, %v222, %v201
    %v224 = vsub.f32 0.0, %v214
    %vm225 = vcmp.lt.f32.partialorder %v210, %v224
    %vm226 = vmand %vm217, %vm225
    %v227 = vmul.f32 %v216, %v210
    %v228 = vmin.f32 %v227, -1.0
    %v229 = vmax.f32 %v228, %v224
    %v230 = vsel %vm226, %v229, %v210
    %v231 = vmax.f32 %v230, %v191
    %v232 = vmax.f32 %v230, %v192
    %v233 = vmin.f32 %v223, %v231
    %v234 = vmin.f32 %v223, %v232
    %235 = vst [vmem:[#allocation10] sm:$0xff] %v233
    %236 = vst [vmem:[#allocation10 + $0x8] sm:$0xff] %v234
    // Predicated region
    $region42: #{tpu_custom_call.1} parent=1 // pred_check
      _
    $region43: #{tpu_custom_call.1} parent=1 // pred_check_branch
      %238 = sbr.rel (0) target = $region45
    $region44: #{tpu_custom_call.1} parent=1 // pred_region
      %240 = vsyncadd [#allocation4], 0
      %s242 = sshll.u32 [#allocation10], 4
      %s243 = int_to_ptr.vmem [resolvable:$true] %s242
      %s244 = sshll.u32 %s6, 4
      %s245 = int_to_ptr.hbm [resolvable:$true] %s244
      %247 = dma.vmem_to_hbm [thread:$0]  %s243, 256, %s245, [#allocation4]
    $region45: #{tpu_custom_call.1} parent=1 // pred_fallthru
      _
    // Predicated region
    $region46: #{tpu_custom_call.1} parent=1 // pred_check
      _
    $region47: #{tpu_custom_call.1} parent=1 // pred_check_branch
      %249 = sbr.rel (0) target = $region49
    $region48: #{tpu_custom_call.1} parent=1 // pred_region
      %251 = vsyncadd [#allocation12], 0
      %s253 = sshll.u32 [#allocation11], 4
      %s254 = int_to_ptr.vmem [resolvable:$true] %s253
      %s255 = sshll.u32 %s7, 4
      %s256 = int_to_ptr.hbm [resolvable:$true] %s255
      %258 = dma.vmem_to_hbm [thread:$0]  %s254, 32, %s256, [#allocation12]
    $region49: #{tpu_custom_call.1} parent=1 // pred_fallthru
      _
    // Predicated region
    $region50: #{tpu_custom_call.1} parent=1 // pred_check
      _
    $region51: #{tpu_custom_call.1} parent=1 // pred_check_branch
      %260 = sbr.rel (0) target = $region53
    $region52: #{tpu_custom_call.1} parent=1 // pred_region
      %262 = dma.done [#allocation4], 256
    $region53: #{tpu_custom_call.1} parent=1 // pred_fallthru
      _
    // Predicated region
    $region54: #{tpu_custom_call.1} parent=1 // pred_check
      _
    $region55: #{tpu_custom_call.1} parent=1 // pred_check_branch
      %264 = sbr.rel (0) target = $region57
    $region56: #{tpu_custom_call.1} parent=1 // pred_region
      %266 = dma.done [#allocation12], 32
    $region57: #{tpu_custom_call.1} parent=1 // pred_fallthru
      _
    %267 = vsyncpa [#allocation3], 1
    %268 = vsyncpa [#allocation8], 1
    %269 = vsyncpa [#allocation4], 1
    %270 = vsyncpa [#allocation12], 1
    %271 = vsyncpa [#allocation5], 1

</llo_original>
